<compile_context>
chip_gen: v7x
topology: tpu7x:2x2x1
jax: 0.10.0
libtpu: 0.0.40
codegen_flags: <defaults>
</compile_context>

<pallas_src>
import functools

import jax
import jax.numpy as jnp
from jax import lax
from jax.experimental import pallas as pl
from jax.experimental.pallas import tpu as pltpu


# --------------------------------------------------------------------------- #
# Fused single-pass kernel (whole activation resident in VMEM)
# --------------------------------------------------------------------------- #
def _fused_kernel(x_ref, gamma_ref, beta_ref, alpha_ref, o_ref, *, eps):
    x = x_ref[...].astype(jnp.float32)                      # (N, C, HW)
    n, c, hw = x.shape
    cnt = jnp.float32(n * hw)

    # per-channel sum / sum-of-squares: VALU add over N, one XLU lane reduce
    xs = jnp.sum(x, axis=0)                                 # (C, HW)
    xq = jnp.sum(x * x, axis=0)                             # (C, HW)
    s = jnp.sum(xs, axis=-1, keepdims=True)                 # (C, 1)
    ss = jnp.sum(xq, axis=-1, keepdims=True)                # (C, 1)

    mean = s / cnt
    var = ss / cnt - mean * mean                            # biased variance
    inv_std = lax.rsqrt(var + jnp.float32(eps))
    scale = gamma_ref[...] * inv_std                        # (C, 1)
    bias = beta_ref[...] - mean * scale                     # (C, 1)
    alpha = alpha_ref[...]                                  # (C, 1)

    y = x * scale[None] + bias[None]                        # (N, C, HW)
    o_ref[...] = jnp.where(y > 0, y, alpha[None] * y).astype(o_ref.dtype)


# --------------------------------------------------------------------------- #
# Tiled pass 1: per-channel, per-N-slice partial sum / sum-of-squares
# --------------------------------------------------------------------------- #
def _reduce_kernel(x_ref, sum_ref, sumsq_ref, *, hw, tm):
    mi = pl.program_id(1)

    @pl.when(mi == 0)
    def _():
        sum_ref[...] = jnp.zeros_like(sum_ref)
        sumsq_ref[...] = jnp.zeros_like(sumsq_ref)

    x = x_ref[...].astype(jnp.float32)                      # (bn, C, tm)

    if hw % tm != 0:
        # Partial last lane-tile: mask stale lanes so stats stay unbiased.
        lane = lax.broadcasted_iota(jnp.int32, x.shape, 2) + mi * tm
        x = jnp.where(lane < hw, x, jnp.float32(0.0))

    xs = jnp.sum(x, axis=0)                                 # (C, tm)  VALU
    xq = jnp.sum(x * x, axis=0)                             # (C, tm)  VALU
    sum_ref[...] += jnp.sum(xs, axis=-1, keepdims=True)[None]     # (1, C, 1)
    sumsq_ref[...] += jnp.sum(xq, axis=-1, keepdims=True)[None]   # (1, C, 1)


# --------------------------------------------------------------------------- #
# Tiled pass 2: y = x*scale + bias ; out = y if y > 0 else alpha*y
# --------------------------------------------------------------------------- #
def _apply_kernel(x_ref, scale_ref, bias_ref, alpha_ref, o_ref):
    x = x_ref[...].astype(jnp.float32)                      # (bn, C, tm)
    scale = scale_ref[...][None]                            # (1, C, 1)
    bias = bias_ref[...][None]
    alpha = alpha_ref[...][None]
    y = x * scale + bias
    o_ref[...] = jnp.where(y > 0, y, alpha * y).astype(o_ref.dtype)


# --------------------------------------------------------------------------- #
# Wrapper
# --------------------------------------------------------------------------- #
def bn_prelu(x_nchw, gamma, beta, alpha, *, eps=1e-3,
             block_m=2048, target_block_bytes=2 << 20,
             fused_bytes_limit=8 << 20, force_tiled=False):
    """x_nchw: (N, C, H, W).  gamma/beta/alpha: (C,)."""
    n, c, h, w = x_nchw.shape
    hw = h * w
    x3 = x_nchw.reshape(n, c, hw)                           # free reshape
    itemsize = jnp.dtype(x3.dtype).itemsize
    total_bytes = n * c * hw * itemsize

    gamma_c1 = gamma.reshape(c, 1).astype(jnp.float32)
    beta_c1 = beta.reshape(c, 1).astype(jnp.float32)
    alpha_c1 = alpha.reshape(c, 1).astype(jnp.float32)

    vmem_params = dict(vmem_limit_bytes=48 << 20)           # safe on v5e/v6e/v7x

    # ------------------ fused fast path: whole x fits in VMEM ------------------
    if (not force_tiled) and total_bytes <= fused_bytes_limit:
        out3 = pl.pallas_call(
            functools.partial(_fused_kernel, eps=eps),
            out_shape=jax.ShapeDtypeStruct((n, c, hw), x3.dtype),
            compiler_params=pltpu.CompilerParams(**vmem_params),
            cost_estimate=pl.CostEstimate(
                flops=7 * n * c * hw, transcendentals=c,
                bytes_accessed=2 * total_bytes),
        )(x3, gamma_c1, beta_c1, alpha_c1)
        return out3.reshape(n, c, h, w)

    # --------------------------- tiled two-pass path ---------------------------
    # Lane tile: full H*W if small, else a 128-multiple; cap so one (1,C,tm)
    # slab stays near target_block_bytes.
    if hw > block_m:
        tm = (block_m // 128) * 128
    else:
        tm = hw
    if c * tm * itemsize > target_block_bytes and hw > 128:
        tm_cap = max(128, ((target_block_bytes // (c * itemsize)) // 128) * 128)
        tm = min(tm, tm_cap)
    m_tiles = pl.cdiv(hw, tm)

    # Batch-block multiple N per grid step (sublane/overhead amortization);
    # pick the largest divisor of N within the byte budget (no N-masking).
    bn_budget = max(1, target_block_bytes // max(1, c * tm * itemsize))
    bn = 1
    for d in range(min(n, int(bn_budget)), 0, -1):
        if n % d == 0:
            bn = d
            break
    n_blocks = n // bn

    # ---- pass 1: per-slice partial sum / sum-of-squares (megacore-shardable) --
    s_part, ss_part = pl.pallas_call(
        functools.partial(_reduce_kernel, hw=hw, tm=tm),
        out_shape=(jax.ShapeDtypeStruct((n_blocks, c, 1), jnp.float32),
                   jax.ShapeDtypeStruct((n_blocks, c, 1), jnp.float32)),
        grid_spec=pltpu.PrefetchScalarGridSpec(
            num_scalar_prefetch=0,
            grid=(n_blocks, m_tiles),
            in_specs=[pl.BlockSpec((bn, c, tm), lambda ni, mi: (ni, 0, mi))],
            out_specs=(pl.BlockSpec((1, c, 1), lambda ni, mi: (ni, 0, 0)),
                       pl.BlockSpec((1, c, 1), lambda ni, mi: (ni, 0, 0))),
        ),
        compiler_params=pltpu.CompilerParams(
            dimension_semantics=("parallel", "arbitrary"), **vmem_params),
        cost_estimate=pl.CostEstimate(
            flops=3 * n * c * hw, transcendentals=0,
            bytes_accessed=total_bytes + 2 * n_blocks * c * 4),
    )(x3)

    # ---- fold BN into per-channel scale/bias (tiny (C,1) XLA epilogue) --------
    s = jnp.sum(s_part, axis=0)                             # (C, 1)
    ss = jnp.sum(ss_part, axis=0)                           # (C, 1)
    count = jnp.float32(n * hw)
    mean = s / count
    var = ss / count - mean * mean                          # biased variance
    inv_std = lax.rsqrt(var + jnp.float32(eps))
    scale = gamma_c1 * inv_std
    bias = beta_c1 - mean * scale

    # ---- pass 2: normalize + PReLU (elementwise, fully parallel) --------------
    out3 = pl.pallas_call(
        _apply_kernel,
        out_shape=jax.ShapeDtypeStruct((n, c, hw), x3.dtype),
        grid_spec=pltpu.PrefetchScalarGridSpec(
            num_scalar_prefetch=0,
            grid=(n_blocks, m_tiles),
            in_specs=[pl.BlockSpec((bn, c, tm), lambda ni, mi: (ni, 0, mi)),
                      pl.BlockSpec((c, 1), lambda ni, mi: (0, 0)),
                      pl.BlockSpec((c, 1), lambda ni, mi: (0, 0)),
                      pl.BlockSpec((c, 1), lambda ni, mi: (0, 0))],
            out_specs=pl.BlockSpec((bn, c, tm), lambda ni, mi: (ni, 0, mi)),
        ),
        compiler_params=pltpu.CompilerParams(
            dimension_semantics=("parallel", "parallel"), **vmem_params),
        cost_estimate=pl.CostEstimate(
            flops=4 * n * c * hw, transcendentals=0,
            bytes_accessed=2 * total_bytes),
    )(x3, scale, bias, alpha_c1)

    return out3.reshape(n, c, h, w)


if __name__ == "__main__":
    key = jax.random.PRNGKey(0)
    N, C, H, W = 2, 4, 16, 16
    x = jax.random.normal(key, (N, C, H, W), dtype=jnp.float32)

    # Deterministic parameters matching nn.BatchNorm2d / nn.PReLU defaults.
    gamma = jnp.ones((C,), dtype=jnp.float32)         # bn.weight
    beta = jnp.zeros((C,), dtype=jnp.float32)         # bn.bias
    alpha = jnp.full((C,), 0.25, dtype=jnp.float32)   # prelu.weight

    # Plain-JAX reference (training-mode batch stats, eps = 1e-3).
    mean = jnp.mean(x, axis=(0, 2, 3), keepdims=True)
    var = jnp.var(x, axis=(0, 2, 3), keepdims=True)
    y = (x - mean) / jnp.sqrt(var + 1e-3) * gamma.reshape(1, C, 1, 1) \
        + beta.reshape(1, C, 1, 1)
    ref = jnp.where(y > 0, y, alpha.reshape(1, C, 1, 1) * y)

    # Fused (VMEM-resident) fast path.
    out_fused = jax.block_until_ready(bn_prelu(x, gamma, beta, alpha))
    assert jnp.allclose(out_fused, ref, atol=1e-5, rtol=1e-5), \
        float(jnp.max(jnp.abs(out_fused - ref)))

    # Tiled two-pass path (the large-activation code path).
    out_tiled = jax.block_until_ready(
        bn_prelu(x, gamma, beta, alpha, force_tiled=True))
    assert jnp.allclose(out_tiled, ref, atol=1e-5, rtol=1e-5), \
        float(jnp.max(jnp.abs(out_tiled - ref)))

    print("KERNEL_OK")
</pallas_src>

<mosaic_0001>
module attributes {stable_mosaic.version = 11 : i64} {
  func.func @_fused_kernel(%arg0: memref<2x4x256xf32, #tpu.memory_space<vmem>>, %arg1: memref<4x1xf32, #tpu.memory_space<vmem>>, %arg2: memref<4x1xf32, #tpu.memory_space<vmem>>, %arg3: memref<4x1xf32, #tpu.memory_space<vmem>>, %arg4: memref<2x4x256xf32, #tpu.memory_space<vmem>>) attributes {dimension_semantics = [], scalar_prefetch = 0 : i64, scratch_operands = 0 : i64, tpu.core_type = #tpu.core_type<tc>} {
    %c0 = arith.constant 0 : index
    %c0_0 = arith.constant 0 : index
    %c0_1 = arith.constant 0 : index
    %0 = vector.load %arg0[%c0, %c0_0, %c0_1] : memref<2x4x256xf32, #tpu.memory_space<vmem>>, vector<2x4x256xf32>
    %cst = arith.constant dense<0.000000e+00> : vector<4x256xf32>
    %1 = vector.multi_reduction <add>, %0, %cst [0] : vector<2x4x256xf32> to vector<4x256xf32>
    %2 = arith.mulf %0, %0 : vector<2x4x256xf32>
    %cst_2 = arith.constant dense<0.000000e+00> : vector<4x256xf32>
    %3 = vector.multi_reduction <add>, %2, %cst_2 [0] : vector<2x4x256xf32> to vector<4x256xf32>
    %cst_3 = arith.constant dense<0.000000e+00> : vector<4xf32>
    %4 = vector.multi_reduction <add>, %1, %cst_3 [1] : vector<4x256xf32> to vector<4xf32>
    %5 = vector.shape_cast %4 : vector<4xf32> to vector<4x1xf32>
    %cst_4 = arith.constant dense<0.000000e+00> : vector<4xf32>
    %6 = vector.multi_reduction <add>, %3, %cst_4 [1] : vector<4x256xf32> to vector<4xf32>
    %7 = vector.shape_cast %6 : vector<4xf32> to vector<4x1xf32>
    %cst_5 = arith.constant 5.120000e+02 : f32
    %8 = vector.broadcast %cst_5 : f32 to vector<4x1xf32>
    %9 = arith.divf %5, %8 : vector<4x1xf32>
    %cst_6 = arith.constant 5.120000e+02 : f32
    %10 = vector.broadcast %cst_6 : f32 to vector<4x1xf32>
    %11 = arith.divf %7, %10 : vector<4x1xf32>
    %12 = arith.mulf %9, %9 : vector<4x1xf32>
    %13 = arith.subf %11, %12 : vector<4x1xf32>
    %cst_7 = arith.constant 1.000000e-03 : f32
    %14 = vector.broadcast %cst_7 : f32 to vector<4x1xf32>
    %15 = arith.addf %13, %14 : vector<4x1xf32>
    %16 = math.rsqrt %15 : vector<4x1xf32>
    %c0_8 = arith.constant 0 : index
    %c0_9 = arith.constant 0 : index
    %17 = vector.load %arg1[%c0_8, %c0_9] : memref<4x1xf32, #tpu.memory_space<vmem>>, vector<4x1xf32>
    %18 = arith.mulf %17, %16 : vector<4x1xf32>
    %c0_10 = arith.constant 0 : index
    %c0_11 = arith.constant 0 : index
    %19 = vector.load %arg2[%c0_10, %c0_11] : memref<4x1xf32, #tpu.memory_space<vmem>>, vector<4x1xf32>
    %20 = arith.mulf %9, %18 : vector<4x1xf32>
    %21 = arith.subf %19, %20 : vector<4x1xf32>
    %c0_12 = arith.constant 0 : index
    %c0_13 = arith.constant 0 : index
    %22 = vector.load %arg3[%c0_12, %c0_13] : memref<4x1xf32, #tpu.memory_space<vmem>>, vector<4x1xf32>
    %23 = vector.shape_cast %18 : vector<4x1xf32> to vector<1x4x1xf32>
    %24 = vector.broadcast %23 : vector<1x4x1xf32> to vector<2x4x256xf32>
    %25 = arith.mulf %0, %24 : vector<2x4x256xf32>
    %26 = vector.shape_cast %21 : vector<4x1xf32> to vector<1x4x1xf32>
    %27 = vector.broadcast %26 : vector<1x4x1xf32> to vector<2x4x256xf32>
    %28 = arith.addf %25, %27 : vector<2x4x256xf32>
    %cst_14 = arith.constant 0.000000e+00 : f32
    %29 = vector.broadcast %cst_14 : f32 to vector<2x4x256xf32>
    %30 = arith.cmpf ogt, %28, %29 : vector<2x4x256xf32>
    %31 = vector.shape_cast %22 : vector<4x1xf32> to vector<1x4x1xf32>
    %32 = vector.broadcast %31 : vector<1x4x1xf32> to vector<2x4x256xf32>
    %33 = arith.mulf %32, %28 : vector<2x4x256xf32>
    %34 = arith.select %30, %28, %33 : vector<2x4x256xi1>, vector<2x4x256xf32>
    %c0_15 = arith.constant 0 : index
    %c0_16 = arith.constant 0 : index
    %c0_17 = arith.constant 0 : index
    %35 = vector.load %arg4[%c0_15, %c0_16, %c0_17] : memref<2x4x256xf32, #tpu.memory_space<vmem>>, vector<2x4x256xf32>
    tpu.vector_store %arg4[%c0_15, %c0_16, %c0_17], %34 {strides = array<i32>} : memref<2x4x256xf32, #tpu.memory_space<vmem>>, vector<2x4x256xf32>,
    return
  }
}

</mosaic_0001>

<llo_original>
// kernel: tpu_custom_call.1
$region0: #{tpu_custom_call.1}
  #allocation0 [shape = 'u32[]', space=smem, size = 0x4, offset = 0x4, fixed_abs, tag = 'smem constant byte address 0x4 - core index']
  #allocation1 [shape = 'u32[144,128]{1,0:T(1,128)}', space=vmem, size = 0x12000, scoped, tag = 'internal scratch']
  %s0 = inlined_call_operand.hbm [shape: f32[2,4,256], index: 0, kind: input, shape index: {}]
  %s1 = inlined_call_operand.vmem [shape: f32[4,1], index: 1, kind: input, shape index: {}]
  %s2 = inlined_call_operand.vmem [shape: f32[4,1], index: 2, kind: input, shape index: {}]
  %s3 = inlined_call_operand.vmem [shape: f32[4,1], index: 3, kind: input, shape index: {}]
  %s4 = inlined_call_operand.hbm [shape: f32[2,4,256], index: 4, kind: output, shape index: {}]
  %s5 = sld [smem:[#allocation0]]
  $region30: #{tpu_custom_call.1} parent=0
    _
  %s7 = ssub.s32 1, %s5
  %s8 = scalar_select 0, %s7, %s5
  $region1: #{tpu_custom_call.1} parent=0
    #allocation2 [shape = 'u8[8192]{0}', space=vmem, size = 0x2000, scoped, tag = 'input window, operand 0, single buffered']
    #allocation3 [shape = 's32[1]{0}', space=sflag, size = 0x4, scoped, tag = 'scoped memory for tpu_custom_call.1']
    #allocation4 [shape = 's32[1]{0}', space=sflag, size = 0x4, scoped, tag = 'scoped memory for tpu_custom_call.1']
    #allocation5 [shape = 'u8[8192]{0}', space=vmem, size = 0x2000, scoped, tag = 'output window, operand 0, single buffered']
    %9 = vsyncpa [#allocation3], 0
    %10 = vsyncpa [#allocation4], 0
    // Predicated region
    $region2: #{tpu_custom_call.1} parent=1 // pred_check
      _
    $region3: #{tpu_custom_call.1} parent=1 // pred_check_branch
      %12 = sbr.rel (0) target = $region5
    $region4: #{tpu_custom_call.1} parent=1 // pred_region
      %s14 = ssub.s32 256, 256
      %15 = vsyncadd [#allocation3], %s14
      %s16 = sshll.u32 [#allocation2], 4
      %s17 = int_to_ptr.vmem [resolvable:$true] %s16
      %22 = dma.hbm_to_vmem [thread:$0]  %s0, 256, %s17, [#allocation3], 128, 128, 8
    $region5: #{tpu_custom_call.1} parent=1 // pred_fallthru
      _
    // Predicated region
    $region6: #{tpu_custom_call.1} parent=1 // pred_check
      _
    $region7: #{tpu_custom_call.1} parent=1 // pred_check_branch
      %24 = sbr.rel (0) target = $region9
    $region8: #{tpu_custom_call.1} parent=1 // pred_region
      _
    $region9: #{tpu_custom_call.1} parent=1 // pred_fallthru
      _
    // Predicated region
    $region10: #{tpu_custom_call.1} parent=1 // pred_check
      _
    $region11: #{tpu_custom_call.1} parent=1 // pred_check_branch
      %26 = sbr.rel (0) target = $region13
    $region12: #{tpu_custom_call.1} parent=1 // pred_region
      _
    $region13: #{tpu_custom_call.1} parent=1 // pred_fallthru
      _
    // Predicated region
    $region14: #{tpu_custom_call.1} parent=1 // pred_check
      _
    $region15: #{tpu_custom_call.1} parent=1 // pred_check_branch
      %28 = sbr.rel (0) target = $region17
    $region16: #{tpu_custom_call.1} parent=1 // pred_region
      _
    $region17: #{tpu_custom_call.1} parent=1 // pred_fallthru
      _
    // Predicated region
    $region18: #{tpu_custom_call.1} parent=1 // pred_check
      _
    $region19: #{tpu_custom_call.1} parent=1 // pred_check_branch
      %30 = sbr.rel (0) target = $region21
    $region20: #{tpu_custom_call.1} parent=1 // pred_region
      %31 = dma.done [#allocation3], 256
    $region21: #{tpu_custom_call.1} parent=1 // pred_fallthru
      _
    %v32 = vld [vmem:[#allocation2] sm:$0xff]
    %v33 = vld [vmem:[#allocation2 + $0x8] sm:$0xff]
    %v36 = vcombine.high %v32, %v32
    %v37 = vcombine.high %v33, %v33
    %vm40 = vcmask 1043456
    %v41 = vsel %vm40, %v32, 0.0
    %v42 = vsel %vm40, %v33, 0.0
    %v43 = vadd.f32 %v41, %v42
    %v44 = vsel %vm40, %v36, 0.0
    %v45 = vsel %vm40, %v37, 0.0
    %v46 = vadd.f32 %v44, %v45
    %v47 = vmul.f32 %v32, %v32
    %v48 = vmul.f32 %v33, %v33
    %v51 = vcombine.high %v47, %v47
    %v52 = vcombine.high %v48, %v48
    %v55 = vsel %vm40, %v47, 0.0
    %v56 = vsel %vm40, %v48, 0.0
    %v57 = vadd.f32 %v55, %v56
    %v58 = vsel %vm40, %v51, 0.0
    %v59 = vsel %vm40, %v52, 0.0
    %v60 = vadd.f32 %v58, %v59
    %v61 = vsel %vm40, %v43, 0.0
    %v62 = vsel %vm40, %v46, 0.0
    %v63 = vadd.f32 %v61, %v62
    %64 = vadd.xlane.f32.xlu0 %v63
    %v65 = vpop.xlane.xlu0 %64
    %v66 = vsel %vm40, %v57, 0.0
    %v67 = vsel %vm40, %v60, 0.0
    %v68 = vadd.f32 %v66, %v67
    %69 = vadd.xlane.f32.xlu0 %v68
    %v70 = vpop.xlane.xlu0 %69
    %v71 = vrcp.pop 512.0
    %v72 = vmul.f32 %v65, %v71
    %v73 = vmul.f32 %v70, %v71
    %v74 = vmul.f32 %v72, %v72
    %v75 = vsub.f32 %v73, %v74
    %v76 = vadd.f32 %v75, 0.001
    %v77 = vrsqrt.pop %v76
    %v78 = vld [vmem:[%s1] sm:$0xf]
    %v79 = vmul.f32 %v78, %v77
    %v80 = vld [vmem:[%s2] sm:$0xf]
    %v81 = vmul.f32 %v72, %v79
    %v82 = vsub.f32 %v80, %v81
    %v83 = vld [vmem:[%s3] sm:$0xf]
    %85 = vset.pattern.permute.xlu0 0
    %86 = vperm.xlu0 %85, %v79
    %v87 = vpop.permute.xlu0 %86
    %v89 = vunpack.c.l.s4 839922192
    %v90 = vunpack.c.0.s8 %v89
    %v91 = vlaneseq
    %v92 = vshrl.u32 %v91, 7
    %v93 = vsub.s32 %v90, %v92
    %v94 = vrot.slane %v87, %v93
    %v96 = vmul.f32 %v32, %v94
    %v97 = vmul.f32 %v33, %v94
    %99 = vset.pattern.permute.xlu0 0
    %100 = vperm.xlu0 %99, %v82
    %v101 = vpop.permute.xlu0 %100
    %v103 = vunpack.c.l.s4 839922192
    %v104 = vunpack.c.0.s8 %v103
    %v105 = vlaneseq
    %v106 = vshrl.u32 %v105, 7
    %v107 = vsub.s32 %v104, %v106
    %v108 = vrot.slane %v101, %v107
    %v110 = vadd.f32 %v96, %v108
    %v111 = vadd.f32 %v97, %v108
    %vm112 = vcmp.gt.f32.partialorder %v110, 0.0
    %vm113 = vcmp.gt.f32.partialorder %v111, 0.0
    %115 = vset.pattern.permute.xlu0 0
    %116 = vperm.xlu0 %115, %v83
    %v117 = vpop.permute.xlu0 %116
    %v121 = vcombine.high %v110, %v110
    %v122 = vcombine.high %v111, %v111
    %v125 = vmul.f32 %v117, %v110
    %v126 = vmul.f32 %v117, %v121
    %v127 = vmul.f32 %v117, %v111
    %v128 = vmul.f32 %v117, %v122
    %v133 = vcombine.low %v125, %v126
    %v134 = vcombine.low %v127, %v128
    %v137 = vsel %vm112, %v110, %v133
    %v138 = vsel %vm113, %v111, %v134
    %139 = vst [vmem:[#allocation5] sm:$0xff] %v137
    %140 = vst [vmem:[#allocation5 + $0x8] sm:$0xff] %v138
    // Predicated region
    $region22: #{tpu_custom_call.1} parent=1 // pred_check
      _
    $region23: #{tpu_custom_call.1} parent=1 // pred_check_branch
      %142 = sbr.rel (0) target = $region25
    $region24: #{tpu_custom_call.1} parent=1 // pred_region
      %s144 = ssub.s32 256, 256
      %145 = vsyncadd [#allocation4], %s144
      %s146 = sshll.u32 [#allocation5], 4
      %s147 = int_to_ptr.vmem [resolvable:$true] %s146
      %152 = dma.vmem_to_hbm [thread:$0]  %s147, 256, %s4, [#allocation4], 128, 128, 8
    $region25: #{tpu_custom_call.1} parent=1 // pred_fallthru
      _
    // Predicated region
    $region26: #{tpu_custom_call.1} parent=1 // pred_check
      _
    $region27: #{tpu_custom_call.1} parent=1 // pred_check_branch
      %154 = sbr.rel (0) target = $region29
    $region28: #{tpu_custom_call.1} parent=1 // pred_region
      %155 = dma.done [#allocation4], 256
    $region29: #{tpu_custom_call.1} parent=1 // pred_fallthru
      _
    %156 = vsyncpa [#allocation3], 1
    %157 = vsyncpa [#allocation4], 1

</llo_original>
